<compile_context>
chip_gen: v5e
topology: v5e:2x2
jax: 0.10.0
libtpu: 0.0.40
codegen_flags: <defaults>
</compile_context>

<pallas_src>
import jax
import jax.numpy as jnp
from jax import lax
from jax.experimental import pallas as pl
from jax.experimental.pallas import tpu as pltpu


def _round_up(x, m):
    return (x + m - 1) // m * m


def _make_kernel(tk, in_mask_size, mask_k):
    """Build the tiled matmul kernel body.

    x_ref: (tm, tk)   activations tile
    w_ref: (tn, tk)   weight tile, PyTorch Linear layout (out, in)
    b_ref: (1,  tn)   bias tile
    o_ref: (tm, tn)   output tile
    acc  : (tm, tn)   f32 accumulator (VMEM scratch, lives across the K axis)
    """

    def kernel(x_ref, w_ref, b_ref, o_ref, acc_ref):
        k = pl.program_id(2)

        @pl.when(k == 0)
        def _init():
            acc_ref[...] = jnp.zeros_like(acc_ref)

        w = w_ref[...]
        if mask_k:
            # The last K tile may run past the physical weight array (OOB reads
            # are unspecified values); zero those columns.  x is zero-padded in
            # the wrapper, so zero * zero == 0 exactly.
            rem = in_mask_size - k * tk
            col = lax.broadcasted_iota(jnp.int32, w.shape, 1)
            w = jnp.where(col < rem, w, jnp.zeros_like(w))

        # y_tile += x_tile @ w_tile.T   (contract last dims) on the MXU.
        acc_ref[...] += lax.dot_general(
            x_ref[...], w,
            dimension_numbers=(((1,), (1,)), ((), ())),
            preferred_element_type=jnp.float32,
        )

        @pl.when(k == pl.num_programs(2) - 1)
        def _finalize():
            y = acc_ref[...] + b_ref[...].astype(jnp.float32)
            o_ref[...] = y.astype(o_ref.dtype)

    return kernel


def mask_linear(x, weight, bias, out_mask_size=None, in_mask_size=None,
                *, tm=256, tn=512, tk=512):
    """Pallas implementation of MaskLinear.forward with prefix masks.

    The full weight/bias arrays are passed to the kernel; only the prefix
    region [:out_mask_size, :in_mask_size] is ever DMA'd, driven by the grid
    extents and BlockSpec index_maps.
    """
    out_features, in_features = weight.shape
    if out_mask_size is None:
        out_mask_size = out_features
    if in_mask_size is None:
        in_mask_size = in_features
    assert 0 < out_mask_size <= out_features, "Invalid output mask size"
    assert 0 < in_mask_size <= in_features, "Invalid input mask size"
    assert x.shape[-1] == in_mask_size, (
        "x feature dim must match number of True entries in in_mask")

    lead_shape = x.shape[:-1]
    m = 1
    for d in lead_shape:
        m *= d
    m = max(m, 1)

    # Adaptive, MXU/lane-aligned tiles; never larger than the padded problem.
    # (tn/tk multiples of 128 cover the v5e 128x128 MXU; the 512 defaults are
    # also multiples of 256 for v6e/v7x, and total buffers stay ~4.5 MiB so
    # the default scoped VMEM limit is fine on every generation.)
    tm = min(tm, _round_up(m, 8))
    tn = min(tn, _round_up(out_mask_size, 128))
    tk = min(tk, _round_up(in_mask_size, 128))

    mp = _round_up(m, tm)
    np_pad = _round_up(out_mask_size, tn)   # lane-dense output width
    kp = _round_up(in_mask_size, tk)

    grid = (mp // tm, np_pad // tn, kp // tk)

    # Zero-pad activations so padded K columns contribute nothing and the
    # M/K extents divide the tiles exactly (activations are cheap to copy;
    # the weight is NOT copied).
    x2 = x.reshape(m, in_mask_size)
    if (mp, kp) != (m, in_mask_size):
        x2 = jnp.pad(x2, ((0, mp - m), (0, kp - in_mask_size)))

    if bias is None:
        bias = jnp.zeros((out_features,), weight.dtype)
    b2 = bias.reshape(1, out_features)

    # Weight-column masking is only needed if the last K tile reads past the
    # physical weight array (otherwise those columns hit real-but-zero-scaled
    # data because x is zero-padded).
    mask_k = kp > in_features

    kernel = _make_kernel(tk, in_mask_size, mask_k)

    itemsize = jnp.dtype(x.dtype).itemsize
    w_itemsize = jnp.dtype(weight.dtype).itemsize
    cost = pl.CostEstimate(
        flops=2 * m * out_mask_size * in_mask_size,
        transcendentals=0,
        bytes_accessed=(m * in_mask_size * itemsize
                        + out_mask_size * in_mask_size * w_itemsize
                        + out_mask_size * w_itemsize
                        + mp * np_pad * itemsize),
    )

    out = pl.pallas_call(
        kernel,
        out_shape=jax.ShapeDtypeStruct((mp, np_pad), x.dtype),
        grid_spec=pltpu.PrefetchScalarGridSpec(
            num_scalar_prefetch=0,
            grid=grid,
            in_specs=[
                pl.BlockSpec((tm, tk), lambda i, j, k: (i, k)),   # x
                pl.BlockSpec((tn, tk), lambda i, j, k: (j, k)),   # weight prefix
                pl.BlockSpec((1, tn), lambda i, j, k: (0, j)),    # bias prefix
            ],
            out_specs=pl.BlockSpec((tm, tn), lambda i, j, k: (i, j)),
            scratch_shapes=[pltpu.VMEM((tm, tn), jnp.float32)],
        ),
        compiler_params=pltpu.CompilerParams(
            dimension_semantics=("parallel", "parallel", "arbitrary"),
        ),
        cost_estimate=cost,
    )(x2, weight, b2)

    # Slice off M/N padding (output written lane-dense inside the kernel).
    out = out[:m, :out_mask_size]
    return out.reshape(*lead_shape, out_mask_size)


if __name__ == "__main__":
    key = jax.random.PRNGKey(0)
    kx, kw, kb = jax.random.split(key, 3)

    batch, seq, in_features, out_features = 2, 8, 32, 48

    # Deterministic "original_linear" parameters (synthetic, not a checkpoint).
    weight = jax.random.normal(kw, (out_features, in_features), jnp.float32) * 0.05
    bias = jax.random.normal(kb, (out_features,), jnp.float32) * 0.1

    # Pruned mask sizes (as produced by set_out_mask_size / set_in_mask_size).
    out_mask_size, in_mask_size = 40, 24

    x_full = jax.random.normal(kx, (batch, seq, in_features), jnp.float32)
    # Input must match the number of surviving input features (prefix mask).
    x = x_full[..., :in_mask_size]

    y = mask_linear(x, weight, bias, out_mask_size, in_mask_size)
    y = jax.block_until_ready(y)

    # Pure-JAX reference of F.linear with the masked weight/bias.
    y_ref = x @ weight[:out_mask_size, :in_mask_size].T + bias[:out_mask_size]

    assert y.shape == (batch, seq, out_mask_size)
    assert jnp.allclose(y, y_ref, atol=1e-5, rtol=1e-5)

    print("KERNEL_OK")
</pallas_src>

<mosaic_0001>
module attributes {stable_mosaic.version = 11 : i64} {
  func.func @kernel(%arg0: i32, %arg1: i32, %arg2: i32, %arg3: memref<16x128xf32, #tpu.memory_space<vmem>>, %arg4: memref<128x128xf32, #tpu.memory_space<vmem>>, %arg5: memref<1x128xf32, #tpu.memory_space<vmem>>, %arg6: memref<16x128xf32, #tpu.memory_space<vmem>>, %arg7: memref<16x128xf32, #tpu.memory_space<vmem>>) attributes {dimension_semantics = [#tpu.dimension_semantics<parallel>, #tpu.dimension_semantics<parallel>, #tpu.dimension_semantics<arbitrary>], iteration_bounds = array<i64: 1, 1, 1>, scalar_prefetch = 0 : i64, scratch_operands = 1 : i64, tpu.core_type = #tpu.core_type<tc>, window_params = [{transform_indices = @transform_0, window_bounds = array<i64: 16, 128>}, {transform_indices = @transform_1, window_bounds = array<i64: 128, 128>}, {transform_indices = @transform_2, window_bounds = array<i64: 1, 128>}, {transform_indices = @transform_3, window_bounds = array<i64: 16, 128>}]} {
    %c0_i32 = arith.constant 0 : i32
    %0 = arith.cmpi eq, %arg2, %c0_i32 : i32
    %1 = arith.extui %0 : i1 to i32
    %c0_i32_0 = arith.constant 0 : i32
    %2 = arith.cmpi ne, %1, %c0_i32_0 : i32
    scf.if %2 {
      %cst_11 = arith.constant 0.000000e+00 : f32
      %19 = vector.broadcast %cst_11 : f32 to vector<16x128xf32>
      %c0_12 = arith.constant 0 : index
      %c0_13 = arith.constant 0 : index
      %20 = vector.load %arg7[%c0_12, %c0_13] : memref<16x128xf32, #tpu.memory_space<vmem>>, vector<16x128xf32>
      tpu.vector_store %arg7[%c0_12, %c0_13], %19 {strides = array<i32>} : memref<16x128xf32, #tpu.memory_space<vmem>>, vector<16x128xf32>,
    } else {
    }
    %c0 = arith.constant 0 : index
    %c0_1 = arith.constant 0 : index
    %3 = vector.load %arg4[%c0, %c0_1] : memref<128x128xf32, #tpu.memory_space<vmem>>, vector<128x128xf32>
    %c128_i32 = arith.constant 128 : i32
    %4 = arith.muli %arg2, %c128_i32 : i32
    %c24_i32 = arith.constant 24 : i32
    %5 = arith.subi %c24_i32, %4 : i32
    %6 = tpu.iota {dimensions = array<i32: 1>} : vector<128x128xi32>
    %7 = vector.broadcast %5 : i32 to vector<128x128xi32>
    %8 = arith.cmpi slt, %6, %7 : vector<128x128xi32>
    %cst = arith.constant 0.000000e+00 : f32
    %9 = vector.broadcast %cst : f32 to vector<128x128xf32>
    %10 = arith.select %8, %3, %9 : vector<128x128xi1>, vector<128x128xf32>
    %c0_2 = arith.constant 0 : index
    %c0_3 = arith.constant 0 : index
    %11 = vector.load %arg7[%c0_2, %c0_3] : memref<16x128xf32, #tpu.memory_space<vmem>>, vector<16x128xf32>
    %c0_4 = arith.constant 0 : index
    %c0_5 = arith.constant 0 : index
    %12 = vector.load %arg3[%c0_4, %c0_5] : memref<16x128xf32, #tpu.memory_space<vmem>>, vector<16x128xf32>
    %cst_6 = arith.constant dense<0.000000e+00> : vector<16x128xf32>
    %13 = tpu.matmul %12, %10, %cst_6 {dimension_numbers = #tpu.dot_dimension_numbers<[1], [1], [0], [0], [0, 0, 1, 0], [], []>} : vector<16x128xf32>, vector<128x128xf32>, vector<16x128xf32> -> vector<16x128xf32>
    %14 = arith.addf %11, %13 : vector<16x128xf32>
    %c0_7 = arith.constant 0 : index
    %c0_8 = arith.constant 0 : index
    %15 = vector.load %arg7[%c0_7, %c0_8] : memref<16x128xf32, #tpu.memory_space<vmem>>, vector<16x128xf32>
    tpu.vector_store %arg7[%c0_7, %c0_8], %14 {strides = array<i32>} : memref<16x128xf32, #tpu.memory_space<vmem>>, vector<16x128xf32>,
    %c0_i32_9 = arith.constant 0 : i32
    %16 = arith.cmpi eq, %arg2, %c0_i32_9 : i32
    %17 = arith.extui %16 : i1 to i32
    %c0_i32_10 = arith.constant 0 : i32
    %18 = arith.cmpi ne, %17, %c0_i32_10 : i32
    scf.if %18 {
      %c0_11 = arith.constant 0 : index
      %c0_12 = arith.constant 0 : index
      %19 = vector.load %arg7[%c0_11, %c0_12] : memref<16x128xf32, #tpu.memory_space<vmem>>, vector<16x128xf32>
      %c0_13 = arith.constant 0 : index
      %c0_14 = arith.constant 0 : index
      %20 = vector.load %arg5[%c0_13, %c0_14] : memref<1x128xf32, #tpu.memory_space<vmem>>, vector<1x128xf32>
      %21 = vector.broadcast %20 : vector<1x128xf32> to vector<16x128xf32>
      %22 = arith.addf %19, %21 : vector<16x128xf32>
      %c0_15 = arith.constant 0 : index
      %c0_16 = arith.constant 0 : index
      %23 = vector.load %arg6[%c0_15, %c0_16] : memref<16x128xf32, #tpu.memory_space<vmem>>, vector<16x128xf32>
      tpu.vector_store %arg6[%c0_15, %c0_16], %22 {strides = array<i32>} : memref<16x128xf32, #tpu.memory_space<vmem>>, vector<16x128xf32>,
    } else {
    }
    return
  }
  func.func @transform_0(%arg0: i32, %arg1: i32, %arg2: i32) -> (i32, i32) {
    %c0_i32 = arith.constant 0 : i32
    return %arg0, %arg2 : i32, i32
  }
  func.func @transform_1(%arg0: i32, %arg1: i32, %arg2: i32) -> (i32, i32) {
    %c0_i32 = arith.constant 0 : i32
    return %arg1, %arg2 : i32, i32
  }
  func.func @transform_2(%arg0: i32, %arg1: i32, %arg2: i32) -> (i32, i32) {
    %c0_i32 = arith.constant 0 : i32
    %c0_i32_0 = arith.constant 0 : i32
    return %c0_i32, %arg1 : i32, i32
  }
  func.func @transform_3(%arg0: i32, %arg1: i32, %arg2: i32) -> (i32, i32) {
    %c0_i32 = arith.constant 0 : i32
    return %arg0, %arg1 : i32, i32
  }
}

</mosaic_0001>

<llo_original>
// kernel: tpu_custom_call.1
$region0: #{tpu_custom_call.1}
  #allocation0 [shape = 'u32[]', space=smem, size = 0x4, offset = 0x4, fixed_abs, tag = 'smem constant byte address 0x4 - core index']
  #allocation1 [shape = 'u32[72,128]{1,0:T(1,128)}', space=vmem, size = 0x9000, scoped, tag = 'internal scratch']
  #allocation2 [shape = 'f32[16,128]{1,0:T(8,128)}', space=vmem, size = 0x2000, scoped, tag = 'scratch operand']
  %s0 = inlined_call_operand.vmem [shape: f32[16,128], index: 0, kind: input, shape index: {}]
  %s1 = inlined_call_operand.vmem [shape: f32[48,32], index: 1, kind: input, shape index: {}]
  %s2 = inlined_call_operand.vmem [shape: f32[1,48], index: 2, kind: input, shape index: {}]
  %s3 = inlined_call_operand.hbm [shape: f32[16,128], index: 3, kind: output, shape index: {}]
  %s4 = sld [smem:[#allocation0]]
  $region30: #{tpu_custom_call.1} parent=0
    _
  %s6 = ssub.s32 1, %s4
  %s7 = scalar_select 0, %s6, %s4
  $region1: #{tpu_custom_call.1} parent=0
    #allocation3 [shape = 'u8[8192]{0}', space=vmem, size = 0x2000, scoped, tag = 'output window, operand 0, single buffered']
    #allocation4 [shape = 's32[1]{0}', space=sflag, size = 0x4, scoped, tag = 'scoped memory for tpu_custom_call.1']
    %8 = vsyncpa [#allocation4], 0
    // Predicated region
    $region2: #{tpu_custom_call.1} parent=1 // pred_check
      _
    $region3: #{tpu_custom_call.1} parent=1 // pred_check_branch
      %10 = sbr.rel (0) target = $region5
    $region4: #{tpu_custom_call.1} parent=1 // pred_region
      _
    $region5: #{tpu_custom_call.1} parent=1 // pred_fallthru
      _
    // Predicated region
    $region6: #{tpu_custom_call.1} parent=1 // pred_check
      _
    $region7: #{tpu_custom_call.1} parent=1 // pred_check_branch
      %12 = sbr.rel (0) target = $region9
    $region8: #{tpu_custom_call.1} parent=1 // pred_region
      _
    $region9: #{tpu_custom_call.1} parent=1 // pred_fallthru
      _
    // Predicated region
    $region10: #{tpu_custom_call.1} parent=1 // pred_check
      _
    $region11: #{tpu_custom_call.1} parent=1 // pred_check_branch
      %14 = sbr.rel (0) target = $region13
    $region12: #{tpu_custom_call.1} parent=1 // pred_region
      _
    $region13: #{tpu_custom_call.1} parent=1 // pred_fallthru
      _
    %p15 = scmp.eq.s32.totalorder 0, 0
    // Predicated region
    $region14: #{tpu_custom_call.1} parent=1 // pred_check
      %p16 = pneg %p15
    $region15: #{tpu_custom_call.1} parent=1 // pred_check_branch
      %18 = sbr.rel (%p16) target = $region17
    $region16: #{tpu_custom_call.1} parent=1 // pred_region
      %19 = vst [vmem:[#allocation2] sm:$0xff] 0.0
      %20 = vst [vmem:[#allocation2 + $0x8] sm:$0xff] 0.0
    $region17: #{tpu_custom_call.1} parent=1 // pred_fallthru
      _
    %v21 = vld [vmem:[%s1] sm:$0xff]
    %v22 = vld [vmem:[%s1 + $0x8] sm:$0xff]
    %v23 = vld [vmem:[%s1 + $0x10] sm:$0xff]
    %v24 = vld [vmem:[%s1 + $0x18] sm:$0xff]
    %v25 = vld [vmem:[%s1 + $0x20] sm:$0xff]
    %v26 = vld [vmem:[%s1 + $0x28] sm:$0xff]
    %v27 = vld [vmem:[%s1 + $0x30] sm:$0xff]
    %v28 = vld [vmem:[%s1 + $0x38] sm:$0xff]
    %v29 = vld [vmem:[%s1 + $0x40] sm:$0xff]
    %v30 = vld [vmem:[%s1 + $0x48] sm:$0xff]
    %v31 = vld [vmem:[%s1 + $0x50] sm:$0xff]
    %v32 = vld [vmem:[%s1 + $0x58] sm:$0xff]
    %v33 = vld [vmem:[%s1 + $0x60] sm:$0xff]
    %v34 = vld [vmem:[%s1 + $0x68] sm:$0xff]
    %v35 = vld [vmem:[%s1 + $0x70] sm:$0xff]
    %v36 = vld [vmem:[%s1 + $0x78] sm:$0xff]
    %s37 = smul.u32 0, 128
    %s38 = ssub.s32 24, %s37
    %v39 = vlaneseq
    %v40 = vand.u32 %v39, 127
    %v41 = vstv %s38
    %vm42 = vcmp.lt.s32.totalorder %v40, %v41
    %v43 = vsel %vm42, %v21, 0.0
    %v44 = vsel %vm42, %v22, 0.0
    %v45 = vsel %vm42, %v23, 0.0
    %v46 = vsel %vm42, %v24, 0.0
    %v47 = vsel %vm42, %v25, 0.0
    %v48 = vsel %vm42, %v26, 0.0
    %v49 = vsel %vm42, %v27, 0.0
    %v50 = vsel %vm42, %v28, 0.0
    %v51 = vsel %vm42, %v29, 0.0
    %v52 = vsel %vm42, %v30, 0.0
    %v53 = vsel %vm42, %v31, 0.0
    %v54 = vsel %vm42, %v32, 0.0
    %v55 = vsel %vm42, %v33, 0.0
    %v56 = vsel %vm42, %v34, 0.0
    %v57 = vsel %vm42, %v35, 0.0
    %v58 = vsel %vm42, %v36, 0.0
    %v59 = vld [vmem:[#allocation2] sm:$0xff]
    %v60 = vld [vmem:[#allocation2 + $0x8] sm:$0xff]
    %v61 = vld [vmem:[%s0] sm:$0xff]
    %v62 = vld [vmem:[%s0 + $0x8] sm:$0xff]
    %63 = vmatpush.xpose.msra.mxu0 %v58
    %64 = vmatpush.xpose.msra.mxu0 %v57
    %65 = vmatpush.xpose.msra.mxu0 %v56
    %66 = vmatpush.xpose.msra.mxu0 %v55
    %67 = vmatpush.xpose.msra.mxu0 %v54
    %68 = vmatpush.xpose.msra.mxu0 %v53
    %69 = vmatpush.xpose.msra.mxu0 %v52
    %70 = vmatpush.xpose.msra.mxu0 %v51
    %71 = vmatpush.xpose.msra.mxu0 %v50
    %72 = vmatpush.xpose.msra.mxu0 %v49
    %73 = vmatpush.xpose.msra.mxu0 %v48
    %74 = vmatpush.xpose.msra.mxu0 %v47
    %75 = vmatpush.xpose.msra.mxu0 %v46
    %76 = vmatpush.xpose.msra.mxu0 %v45
    %77 = vmatpush.xpose.msra.mxu0 %v44
    %78 = vmatpush.xpose.msra.mxu0 %v43
    %79 = vmatmul.f32.gmra.mxu0 %v61
    %v80 = vpop.f32.mrf.mxu0
    %v81 = vadd.f32 0.0, %v80
    %82 = vmatmul.f32.gmra.mxu0 %v62
    %v83 = vpop.f32.mrf.mxu0
    %v84 = vadd.f32 0.0, %v83
    %85 = vdwg.mxu0
    %v86 = vadd.f32 %v59, %v81
    %v87 = vadd.f32 %v60, %v84
    %88 = vst [vmem:[#allocation2] sm:$0xff] %v86
    %89 = vst [vmem:[#allocation2 + $0x8] sm:$0xff] %v87
    // Predicated region
    $region18: #{tpu_custom_call.1} parent=1 // pred_check
      %p90 = pneg %p15
    $region19: #{tpu_custom_call.1} parent=1 // pred_check_branch
      %92 = sbr.rel (%p90) target = $region21
    $region20: #{tpu_custom_call.1} parent=1 // pred_region
      %v93 = vld [vmem:[#allocation2] sm:$0xff]
      %v94 = vld [vmem:[#allocation2 + $0x8] sm:$0xff]
      %v95 = vld [vmem:[%s2] sm:$0x1]
      %v97 = vperm.slane %v95, 0
      %v99 = vadd.f32 %v93, %v97
      %v100 = vadd.f32 %v94, %v97
      %101 = vst [vmem:[#allocation3] sm:$0xff] %v99
      %102 = vst [vmem:[#allocation3 + $0x8] sm:$0xff] %v100
    $region21: #{tpu_custom_call.1} parent=1 // pred_fallthru
      _
    // Predicated region
    $region22: #{tpu_custom_call.1} parent=1 // pred_check
      _
    $region23: #{tpu_custom_call.1} parent=1 // pred_check_branch
      %104 = sbr.rel (0) target = $region25
    $region24: #{tpu_custom_call.1} parent=1 // pred_region
      %106 = vsyncadd [#allocation4], 0
      %s107 = sshll.u32 [#allocation3], 4
      %s108 = int_to_ptr.vmem [resolvable:$true] %s107
      %s109 = sshll.u32 %s3, 4
      %s110 = int_to_ptr.hbm [resolvable:$true] %s109
      %115 = dma.vmem_to_hbm [thread:$0]  %s108, 256, %s110, [#allocation4], 128, 128, 8
    $region25: #{tpu_custom_call.1} parent=1 // pred_fallthru
      _
    // Predicated region
    $region26: #{tpu_custom_call.1} parent=1 // pred_check
      _
    $region27: #{tpu_custom_call.1} parent=1 // pred_check_branch
      %117 = sbr.rel (0) target = $region29
    $region28: #{tpu_custom_call.1} parent=1 // pred_region
      %119 = dma.done [#allocation4], 256
    $region29: #{tpu_custom_call.1} parent=1 // pred_fallthru
      _
    %120 = vsyncpa [#allocation4], 1

</llo_original>
